<compile_context>
chip_gen: v5e
topology: v5e:2x2
jax: 0.10.0
libtpu: 0.0.40
codegen_flags: <defaults>
</compile_context>

<pallas_src>
import math
import functools

import jax
import jax.numpy as jnp
from jax.experimental import pallas as pl
from jax.experimental.pallas import tpu as pltpu


def _round_up(x, m):
    return (x + m - 1) // m * m


# ----------------------------- tiled linear: y = x @ w_t -----------------------------

def _linear_kernel(x_ref, w_ref, o_ref, acc_ref):
    # x: (tm, tk), w: (tk, tn) -- weights were pre-transposed once outside the hot path,
    # so this is the canonical MXU contraction (no per-tile transpose on the weight).
    @pl.when(pl.program_id(2) == 0)
    def _():
        acc_ref[...] = jnp.zeros_like(acc_ref)

    acc_ref[...] += jnp.dot(x_ref[...], w_ref[...],
                            preferred_element_type=jnp.float32)

    @pl.when(pl.program_id(2) == pl.num_programs(2) - 1)
    def _():
        o_ref[...] = acc_ref[...].astype(o_ref.dtype)


def linear(x, w_t, *, tm=512, tn=512, tk=512):
    """y = x @ w_t, with w_t already in (in, out) = (K, N) layout, bias=False."""
    *lead, K = x.shape
    N = w_t.shape[1]
    x2 = x.reshape(-1, K)
    M = x2.shape[0]

    tm = min(tm, _round_up(M, 16))      # 16-row granularity covers fp32 and bf16 tiles
    tn = min(tn, _round_up(N, 128))
    tk = min(tk, _round_up(K, 128))
    Mp, Np, Kp = _round_up(M, tm), _round_up(N, tn), _round_up(K, tk)

    if (Mp, Kp) != (M, K):
        x2 = jnp.pad(x2, ((0, Mp - M), (0, Kp - K)))
    w = w_t
    if (Kp, Np) != (K, N):
        w = jnp.pad(w, ((0, Kp - K), (0, Np - N)))

    out = pl.pallas_call(
        _linear_kernel,
        out_shape=jax.ShapeDtypeStruct((Mp, Np), x.dtype),
        grid=(Mp // tm, Np // tn, Kp // tk),
        in_specs=[
            pl.BlockSpec((tm, tk), lambda i, j, k: (i, k)),
            pl.BlockSpec((tk, tn), lambda i, j, k: (k, j)),
        ],
        out_specs=pl.BlockSpec((tm, tn), lambda i, j, k: (i, j)),
        scratch_shapes=[pltpu.VMEM((tm, tn), jnp.float32)],
        compiler_params=pltpu.CompilerParams(
            dimension_semantics=("parallel", "parallel", "arbitrary")),
    )(x2, w)

    if (Mp, Np) != (M, N):
        out = out[:M, :N]
    return out.reshape(*lead, N)


# ----------------------------- K RoPE kernel -----------------------------

def _rope_kernel(x_ref, c_ref, s_ref, o_ref):
    # x: (ts, D); cos/sin: (ts, D). rotate_half via XLU roll + sign vector (no concat).
    x = x_ref[...].astype(jnp.float32)
    c = c_ref[...].astype(jnp.float32)
    s = s_ref[...].astype(jnp.float32)
    d = x.shape[-1]
    sign = jnp.where(
        jax.lax.broadcasted_iota(jnp.int32, x.shape, 1) < (d // 2),
        -1.0, 1.0).astype(jnp.float32)
    rot = pltpu.roll(x, shift=d // 2, axis=1) * sign          # positive axis (Mosaic req.)
    o_ref[...] = (x * c + rot * s).astype(o_ref.dtype)


def rope_k(k, cos_k, sin_k, *, ts, head_dim):
    # k: (B, S, Hkv*D) head-flat layout; cos/sin: (B, S, D). S must be a multiple of ts.
    B, S, KD = k.shape
    Hkv = KD // head_dim
    # h innermost: cos/sin block index is unchanged across consecutive h steps, so the
    # pipeline skips the re-fetch and cos/sin are streamed once per (b, si) instead of
    # once per head.
    return pl.pallas_call(
        _rope_kernel,
        out_shape=jax.ShapeDtypeStruct(k.shape, k.dtype),
        grid=(B, S // ts, Hkv),
        in_specs=[
            pl.BlockSpec((None, ts, head_dim), lambda b, si, h: (b, si, h)),
            pl.BlockSpec((None, ts, head_dim), lambda b, si, h: (b, si, 0)),
            pl.BlockSpec((None, ts, head_dim), lambda b, si, h: (b, si, 0)),
        ],
        out_specs=pl.BlockSpec((None, ts, head_dim), lambda b, si, h: (b, si, h)),
        compiler_params=pltpu.CompilerParams(
            dimension_semantics=("parallel", "parallel", "parallel")),
    )(k, cos_k, sin_k)


# ----------------------------- flash attention kernel (GQA head-packed) ----------------

def _flash_kernel(q_ref, k_ref, v_ref, cos_ref, sin_ref, m_ref, o_ref,
                  qrot_sc, m_sc, l_sc, acc_sc, *, n_rep, head_dim, scale):
    # q:   (tq, n_rep*D)  -- all query heads sharing this KV group, un-rotated
    # k,v: (tkv, D)       -- one KV head tile (K already RoPE'd)
    # cos/sin: (tq, D)    -- rotary tables for the query rows
    # m:   (tq, tkv)      -- additive mask tile (bf16, finite floor)
    ki = pl.program_id(3)

    @pl.when(ki == 0)
    def _():
        # Fused Q RoPE + 1/sqrt(d) scaling: done once per (b, group, qi) tile and kept in
        # VMEM scratch across the whole KV sweep (saves a full Q HBM round trip).
        c = cos_ref[...].astype(jnp.float32)
        s = sin_ref[...].astype(jnp.float32)
        sign = jnp.where(
            jax.lax.broadcasted_iota(jnp.int32, c.shape, 1) < (head_dim // 2),
            -1.0, 1.0).astype(jnp.float32)
        for r in range(n_rep):
            x = q_ref[:, r * head_dim:(r + 1) * head_dim].astype(jnp.float32)
            rot = pltpu.roll(x, shift=head_dim // 2, axis=1) * sign
            qrot_sc[:, r * head_dim:(r + 1) * head_dim] = (
                (x * c + rot * s) * scale).astype(qrot_sc.dtype)
        m_sc[...] = jnp.full_like(m_sc, -jnp.inf)
        l_sc[...] = jnp.zeros_like(l_sc)
        acc_sc[...] = jnp.zeros_like(acc_sc)

    k = k_ref[...]
    v = v_ref[...]
    mask = m_ref[...].astype(jnp.float32)

    # TODO(synk): fully-masked KV tiles are not skipped because the module accepts an
    # arbitrary additive mask; a known-causal mask would allow a pl.when tile skip.
    for r in range(n_rep):
        q_r = qrot_sc[:, r * head_dim:(r + 1) * head_dim]
        s_r = jax.lax.dot_general(
            q_r, k, dimension_numbers=(((1,), (1,)), ((), ())),
            preferred_element_type=jnp.float32)
        s_r = s_r + mask
        m_prev = m_sc[r]
        m_new = jnp.maximum(m_prev, s_r.max(axis=-1, keepdims=True))
        alpha = jnp.exp(m_prev - m_new)
        p = jnp.exp(s_r - m_new)
        l_sc[r] = alpha * l_sc[r] + p.sum(axis=-1, keepdims=True)
        acc_sc[r] = alpha * acc_sc[r] + jnp.dot(
            p.astype(v.dtype), v, preferred_element_type=jnp.float32)
        m_sc[r] = m_new

    @pl.when(ki == pl.num_programs(3) - 1)
    def _():
        # TODO(synk): attention_dropout is a no-op here (p=0.0 / eval mode in reference).
        for r in range(n_rep):
            inv = pl.reciprocal(l_sc[r], approx=False)
            o_ref[:, r * head_dim:(r + 1) * head_dim] = (
                acc_sc[r] * inv).astype(o_ref.dtype)


def attention_core(q, k, v, cos_q, sin_q, cos_k, sin_k, mask, n_rep, head_dim, scale,
                   *, tq=256, tkv=512):
    """Head-flat (B, S, H*D) flash attention with GQA head packing; Q RoPE fused in."""
    # NOTE: assumes head_dim is a multiple of 128 (true for Llama); lane slices then stay
    # aligned to vreg boundaries and all block shapes satisfy the (8,128) constraint.
    B, Sq, QD = q.shape
    _, Skv, KD = k.shape
    Hkv = KD // head_dim
    H = Hkv * n_rep

    tq = min(tq, _round_up(Sq, 16))
    tkv = min(tkv, _round_up(Skv, 128))
    Sqp, Skvp = _round_up(Sq, tq), _round_up(Skv, tkv)

    if Sqp != Sq:
        q = jnp.pad(q, ((0, 0), (0, Sqp - Sq), (0, 0)))
        cos_q = jnp.pad(cos_q, ((0, 0), (0, Sqp - Sq), (0, 0)))
        sin_q = jnp.pad(sin_q, ((0, 0), (0, Sqp - Sq), (0, 0)))
    if Skvp != Skv:
        k = jnp.pad(k, ((0, 0), (0, Skvp - Skv), (0, 0)))
        v = jnp.pad(v, ((0, 0), (0, Skvp - Skv), (0, 0)))
        cos_k = jnp.pad(cos_k, ((0, 0), (0, Skvp - Skv), (0, 0)))
        sin_k = jnp.pad(sin_k, ((0, 0), (0, Skvp - Skv), (0, 0)))
    if (Sqp, Skvp) != (Sq, Skv):
        # padded kv columns / q rows get a large negative additive mask -> zero weight
        mask = jnp.pad(mask, ((0, 0), (0, Sqp - Sq), (0, Skvp - Skv)),
                       constant_values=-1e9)

    # K RoPE once per KV head (Pallas). Q RoPE + 1/sqrt(d) is fused into the flash kernel.
    # TODO(synk): module semantics re-apply RoPE to the full (past+new) K every call
    # because cached-token positions may shift; a rotated-K cache would avoid this.
    k = rope_k(k, cos_k, sin_k, ts=tkv, head_dim=head_dim)

    # Clamp to a finite floor (a fully -inf row would otherwise produce NaN in the online
    # softmax) and cast to bf16 to halve mask DMA bytes.
    mask = jnp.maximum(mask, -1e30).astype(jnp.bfloat16)

    itemsize = q.dtype.itemsize
    cost = pl.CostEstimate(
        flops=int(4 * B * H * Sqp * Skvp * head_dim),
        transcendentals=int(B * H * Sqp * Skvp),
        bytes_accessed=int((q.size + k.size + v.size + cos_q.size + sin_q.size) * itemsize
                           + Hkv * mask.size * mask.dtype.itemsize
                           + B * Sqp * H * head_dim * itemsize))

    kernel = functools.partial(_flash_kernel, n_rep=n_rep, head_dim=head_dim,
                               scale=float(scale))

    # TODO(synk): the mask is an arbitrary additive tensor in the module API, so it is
    # streamed tile-by-tile; a purely causal/beacon mask could be generated in-kernel.
    out = pl.pallas_call(
        kernel,
        out_shape=jax.ShapeDtypeStruct((B, Sqp, QD), q.dtype),
        grid=(B, Hkv, Sqp // tq, Skvp // tkv),
        in_specs=[
            # all n_rep query heads of KV group g in one block -> K/V streamed once/group
            pl.BlockSpec((None, tq, n_rep * head_dim), lambda b, g, qi, ki: (b, qi, g)),
            pl.BlockSpec((None, tkv, head_dim), lambda b, g, qi, ki: (b, ki, g)),
            pl.BlockSpec((None, tkv, head_dim), lambda b, g, qi, ki: (b, ki, g)),
            pl.BlockSpec((None, tq, head_dim), lambda b, g, qi, ki: (b, qi, 0)),
            pl.BlockSpec((None, tq, head_dim), lambda b, g, qi, ki: (b, qi, 0)),
            pl.BlockSpec((None, tq, tkv), lambda b, g, qi, ki: (b, qi, ki)),
        ],
        out_specs=pl.BlockSpec((None, tq, n_rep * head_dim),
                               lambda b, g, qi, ki: (b, qi, g)),
        scratch_shapes=[
            pltpu.VMEM((tq, n_rep * head_dim), q.dtype),       # RoPE'd + scaled Q
            pltpu.VMEM((n_rep, tq, 1), jnp.float32),           # running max
            pltpu.VMEM((n_rep, tq, 1), jnp.float32),           # running sum
            pltpu.VMEM((n_rep, tq, head_dim), jnp.float32),    # output accumulator
        ],
        compiler_params=pltpu.CompilerParams(
            dimension_semantics=("parallel", "parallel", "parallel", "arbitrary")),
        cost_estimate=cost,
    )(q, k, v, cos_q, sin_q, mask)

    if Sqp != Sq:
        out = out[:, :Sq, :]
    return out


# ----------------------------- glue / module -----------------------------

def rotary_cos_sin(head_dim, seq_len, base=10000.0, dtype=jnp.float32):
    inv_freq = 1.0 / (base ** (jnp.arange(0, head_dim, 2, dtype=jnp.float32) / head_dim))
    t = jnp.arange(seq_len, dtype=jnp.float32)
    freqs = jnp.outer(t, inv_freq)
    emb = jnp.concatenate([freqs, freqs], axis=-1)
    return jnp.cos(emb).astype(dtype), jnp.sin(emb).astype(dtype)


def init_params(key, cfg):
    hs = cfg["hidden_size"]
    nh, nkv = cfg["num_heads"], cfg["num_kv_heads"]
    hd = hs // nh
    ks = jax.random.split(key, 8)
    std = 0.02
    p = {
        "q_proj": jax.random.normal(ks[0], (nh * hd, hs), jnp.float32) * std,
        "k_proj": jax.random.normal(ks[1], (nkv * hd, hs), jnp.float32) * std,
        "v_proj": jax.random.normal(ks[2], (nkv * hd, hs), jnp.float32) * std,
        "o_proj": jax.random.normal(ks[3], (hs, nh * hd), jnp.float32) * std,
    }
    bp = cfg["beacon_param"]
    if "q" in bp:
        p["beacon_q_proj"] = jax.random.normal(ks[4], (nh * hd, hs), jnp.float32) * std
    if "k" in bp:
        p["beacon_k_proj"] = jax.random.normal(ks[5], (nkv * hd, hs), jnp.float32) * std
    if "v" in bp:
        p["beacon_v_proj"] = jax.random.normal(ks[6], (nkv * hd, hs), jnp.float32) * std
    if "o" in bp:
        p["beacon_o_proj"] = jax.random.normal(ks[7], (hs, nh * hd), jnp.float32) * std
    return p


def prepare_attention_params(params, cfg):
    """One-time parameter prep: fuse q/k/v weights along N and pre-transpose to (K, N).

    Done once outside the hot path so the matmul kernel runs the canonical
    [tm,tk] x [tk,tn] contraction and hidden_states is read from HBM once per call.
    If a projection is not in beacon_param, the module applies the ordinal weight to the
    beacon tail too, which is what substituting the ordinal weight here reproduces."""
    bp = cfg["beacon_param"]
    wq, wk, wv, wo = params["q_proj"], params["k_proj"], params["v_proj"], params["o_proj"]
    bwq = params["beacon_q_proj"] if "q" in bp else wq
    bwk = params["beacon_k_proj"] if "k" in bp else wk
    bwv = params["beacon_v_proj"] if "v" in bp else wv
    bwo = params["beacon_o_proj"] if "o" in bp else wo
    return {
        "wqkv_t": jnp.concatenate([wq, wk, wv], axis=0).T,
        "wqkv_beacon_t": jnp.concatenate([bwq, bwk, bwv], axis=0).T,
        "wo_t": wo.T,
        "wo_beacon_t": bwo.T,
    }


def _tail_linear(x, w_t):
    # Tiny beacon tail (a handful of tokens): a plain XLA matmul avoids paying a
    # sub-16-row pallas_call launch + masked partial stores for almost no FLOPs.
    return jnp.einsum("bsk,kn->bsn", x, w_t, precision=jax.lax.Precision.HIGHEST)


def llama_attention_forward(prep, cfg, hidden_states, attention_mask,
                            position_ids, past_key_value):
    bsz, q_len, _ = hidden_states.shape
    nh, nkv = cfg["num_heads"], cfg["num_kv_heads"]
    hd = cfg["hidden_size"] // nh
    n_rep = nh // nkv
    q_out, kv_out = nh * hd, nkv * hd

    past_key, past_value, beacon_size, raw_size_to_cache, window_size = past_key_value
    past_seq_len = past_key.shape[2] if past_key is not None else 0
    kv_seq_len = q_len + past_seq_len

    # --- fused QKV projection: one pallas_call reads hidden_states once ---
    if beacon_size > 0:
        if q_len > beacon_size:
            qkv_ord = linear(hidden_states[:, :q_len - beacon_size], prep["wqkv_t"])
            qkv_bcn = _tail_linear(hidden_states[:, q_len - beacon_size:],
                                   prep["wqkv_beacon_t"])
            qkv = jnp.concatenate([qkv_ord, qkv_bcn], axis=1)
        else:
            qkv = _tail_linear(hidden_states, prep["wqkv_beacon_t"])
    else:
        qkv = linear(hidden_states, prep["wqkv_t"])

    # Keep everything in the projection-native (B, S, H*D) layout -- heads are addressed
    # through BlockSpec index maps, so no physical (0,2,1,3) transposes are needed.
    query_states = qkv[..., :q_out]
    key_states = qkv[..., q_out:q_out + kv_out]
    value_states = qkv[..., q_out + kv_out:]

    if past_key is not None:
        # past_* arrive in the module's (B, Hkv, S, D) layout
        past_k = past_key.transpose(0, 2, 1, 3).reshape(bsz, past_seq_len, kv_out)
        past_v = past_value.transpose(0, 2, 1, 3).reshape(bsz, past_seq_len, kv_out)
        key_states = jnp.concatenate([past_k, key_states], axis=1)
        value_states = jnp.concatenate([past_v, value_states], axis=1)

    # cache returned in the module's canonical (B, Hkv, S, D) layout (unrotated K/V)
    # TODO(synk): callers that adopt the (B, S, Hkv*D) layout could skip this transpose.
    new_past = (
        key_states.reshape(bsz, kv_seq_len, nkv, hd).transpose(0, 2, 1, 3),
        value_states.reshape(bsz, kv_seq_len, nkv, hd).transpose(0, 2, 1, 3),
        beacon_size, raw_size_to_cache, window_size)

    cos, sin = rotary_cos_sin(hd, kv_seq_len, base=cfg["rope_theta"],
                              dtype=hidden_states.dtype)
    key_position_ids = position_ids                       # (bsz, kv_seq_len)
    query_position_ids = key_position_ids[:, -q_len:]
    cos_k, sin_k = cos[key_position_ids], sin[key_position_ids]      # (bsz, kv, hd)
    cos_q, sin_q = cos[query_position_ids], sin[query_position_ids]  # (bsz, q,  hd)

    if attention_mask is None:
        mask = jnp.zeros((bsz, q_len, kv_seq_len), jnp.float32)
    else:
        mask = attention_mask[:, 0]                        # (bsz, q, kv)

    scale = 1.0 / math.sqrt(hd)
    attn = attention_core(query_states, key_states, value_states,
                          cos_q, sin_q, cos_k, sin_k,
                          mask, n_rep, hd, scale)          # (B, q, nh*hd) head-flat

    if beacon_size > 0:
        if q_len > beacon_size:
            out_ord = linear(attn[:, :q_len - beacon_size], prep["wo_t"])
            out_bcn = _tail_linear(attn[:, q_len - beacon_size:], prep["wo_beacon_t"])
            attn_output = jnp.concatenate([out_ord, out_bcn], axis=1)
        else:
            attn_output = _tail_linear(attn, prep["wo_beacon_t"])
    else:
        attn_output = linear(attn, prep["wo_t"])

    return attn_output, None, new_past


# ----------------------------- pure-JAX reference -----------------------------

def _rotate_half(x):
    x1 = x[..., : x.shape[-1] // 2]
    x2 = x[..., x.shape[-1] // 2:]
    return jnp.concatenate([-x2, x1], axis=-1)


def _apply_rotary_single(x, cos, sin, position_ids):
    c = cos[position_ids][:, None]
    s = sin[position_ids][:, None]
    return x * c + _rotate_half(x) * s


def _repeat_kv(x, n_rep):
    b, h, s, d = x.shape
    if n_rep == 1:
        return x
    return jnp.broadcast_to(x[:, :, None], (b, h, n_rep, s, d)).reshape(b, h * n_rep, s, d)


def ref_forward(params, cfg, hidden_states, attention_mask, position_ids, past_key_value):
    bsz, q_len, _ = hidden_states.shape
    nh, nkv = cfg["num_heads"], cfg["num_kv_heads"]
    hd = cfg["hidden_size"] // nh
    n_rep = nh // nkv
    bp = cfg["beacon_param"]
    past_key, past_value, beacon_size, _, _ = past_key_value
    past_seq_len = past_key.shape[2] if past_key is not None else 0
    kv_seq_len = q_len + past_seq_len
    hi = jax.lax.Precision.HIGHEST

    def lin(x, w):
        return jnp.matmul(x, w.T, precision=hi)

    def proj(x, w, bw, name):
        if beacon_size > 0 and name in bp:
            return jnp.concatenate(
                [lin(x[:, :-beacon_size], w), lin(x[:, -beacon_size:], bw)], axis=1)
        return lin(x, w)

    q = proj(hidden_states, params["q_proj"], params.get("beacon_q_proj"), "q")
    k = proj(hidden_states, params["k_proj"], params.get("beacon_k_proj"), "k")
    v = proj(hidden_states, params["v_proj"], params.get("beacon_v_proj"), "v")
    q = q.reshape(bsz, q_len, nh, hd).transpose(0, 2, 1, 3)
    k = k.reshape(bsz, q_len, nkv, hd).transpose(0, 2, 1, 3)
    v = v.reshape(bsz, q_len, nkv, hd).transpose(0, 2, 1, 3)
    cos, sin = rotary_cos_sin(hd, kv_seq_len, base=cfg["rope_theta"])
    if past_key is not None:
        k = jnp.concatenate([past_key, k], axis=2)
        v = jnp.concatenate([past_value, v], axis=2)
    key_pos = position_ids
    qry_pos = key_pos[:, -q_len:]
    k = _apply_rotary_single(k, cos, sin, key_pos)
    q = _apply_rotary_single(q, cos, sin, qry_pos)
    k = _repeat_kv(k, n_rep)
    v = _repeat_kv(v, n_rep)
    w = jnp.matmul(q, k.transpose(0, 1, 3, 2), precision=hi) / math.sqrt(hd)
    w = w + attention_mask
    w = jax.nn.softmax(w.astype(jnp.float32), axis=-1).astype(q.dtype)
    o = jnp.matmul(w, v, precision=hi)
    o = o.transpose(0, 2, 1, 3).reshape(bsz, q_len, cfg["hidden_size"])
    if beacon_size > 0 and "o" in bp:
        o = jnp.concatenate(
            [lin(o[:, :-beacon_size], params["o_proj"]),
             lin(o[:, -beacon_size:], params["beacon_o_proj"])], axis=1)
    else:
        o = lin(o, params["o_proj"])
    return o


# ----------------------------- main -----------------------------

if __name__ == "__main__":
    B, S = 2, 8
    num_heads, num_kv_heads, head_dim = 4, 2, 128
    hidden = num_heads * head_dim  # 512
    cfg = dict(hidden_size=hidden, num_heads=num_heads, num_kv_heads=num_kv_heads,
               rope_theta=10000.0, beacon_param=("q", "k", "v", "o"))

    key = jax.random.PRNGKey(0)
    kp, kh = jax.random.split(key)
    params = init_params(kp, cfg)
    hidden_states = jax.random.normal(kh, (B, S, hidden), jnp.float32)
    position_ids = jnp.broadcast_to(jnp.arange(S, dtype=jnp.int32)[None, :], (B, S))

    # additive causal mask of shape (bsz, 1, q_len, kv_seq_len)
    causal = jnp.where(jnp.arange(S)[:, None] >= jnp.arange(S)[None, :],
                       0.0, -1e9).astype(jnp.float32)
    attention_mask = jnp.broadcast_to(causal[None, None], (B, 1, S, S))

    beacon_size = 2
    past_key_value = (None, None, beacon_size, None, S)

    ref = ref_forward(params, cfg, hidden_states, attention_mask,
                      position_ids, past_key_value)

    # ---- fp32 parity pass ----
    prep = prepare_attention_params(params, cfg)
    out, attn_w, new_past = llama_attention_forward(
        prep, cfg, hidden_states, attention_mask, position_ids, past_key_value)
    jax.block_until_ready(out)
    assert out.shape == (B, S, hidden)
    assert jnp.allclose(out, ref, atol=2e-2, rtol=2e-2), "fp32 mismatch vs reference"

    # ---- bf16 hot path (production default): bf16 activations/weights, fp32 accumulators ----
    params_bf16 = jax.tree_util.tree_map(lambda a: a.astype(jnp.bfloat16), params)
    prep_bf16 = prepare_attention_params(params_bf16, cfg)
    out_bf16, _, _ = llama_attention_forward(
        prep_bf16, cfg, hidden_states.astype(jnp.bfloat16), attention_mask,
        position_ids, past_key_value)
    jax.block_until_ready(out_bf16)
    assert jnp.allclose(out_bf16.astype(jnp.float32), ref,
                        atol=6e-2, rtol=6e-2), "bf16 mismatch vs reference"

    print("KERNEL_OK")
</pallas_src>

<mosaic_0001>
module attributes {stable_mosaic.version = 11 : i64} {
  func.func @_linear_kernel(%arg0: i32, %arg1: i32, %arg2: i32, %arg3: memref<16x512xf32, #tpu.memory_space<vmem>>, %arg4: memref<512x512xf32, #tpu.memory_space<vmem>>, %arg5: memref<16x512xf32, #tpu.memory_space<vmem>>, %arg6: memref<16x512xf32, #tpu.memory_space<vmem>>) attributes {dimension_semantics = [#tpu.dimension_semantics<parallel>, #tpu.dimension_semantics<parallel>, #tpu.dimension_semantics<arbitrary>], iteration_bounds = array<i64: 1, 2, 1>, scalar_prefetch = 0 : i64, scratch_operands = 1 : i64, tpu.core_type = #tpu.core_type<tc>, window_params = [{transform_indices = @transform_0, window_bounds = array<i64: 16, 512>}, {transform_indices = @transform_1, window_bounds = array<i64: 512, 512>}, {transform_indices = @transform_2, window_bounds = array<i64: 16, 512>}]} {
    %c0_i32 = arith.constant 0 : i32
    %0 = arith.cmpi eq, %arg2, %c0_i32 : i32
    %1 = arith.extui %0 : i1 to i32
    %c0_i32_0 = arith.constant 0 : i32
    %2 = arith.cmpi ne, %1, %c0_i32_0 : i32
    scf.if %2 {
      %cst_10 = arith.constant 0.000000e+00 : f32
      %12 = vector.broadcast %cst_10 : f32 to vector<16x512xf32>
      %c0_11 = arith.constant 0 : index
      %c0_12 = arith.constant 0 : index
      %13 = vector.load %arg6[%c0_11, %c0_12] : memref<16x512xf32, #tpu.memory_space<vmem>>, vector<16x512xf32>
      tpu.vector_store %arg6[%c0_11, %c0_12], %12 {strides = array<i32>} : memref<16x512xf32, #tpu.memory_space<vmem>>, vector<16x512xf32>,
    } else {
    }
    %c0 = arith.constant 0 : index
    %c0_1 = arith.constant 0 : index
    %3 = vector.load %arg6[%c0, %c0_1] : memref<16x512xf32, #tpu.memory_space<vmem>>, vector<16x512xf32>
    %c0_2 = arith.constant 0 : index
    %c0_3 = arith.constant 0 : index
    %4 = vector.load %arg3[%c0_2, %c0_3] : memref<16x512xf32, #tpu.memory_space<vmem>>, vector<16x512xf32>
    %c0_4 = arith.constant 0 : index
    %c0_5 = arith.constant 0 : index
    %5 = vector.load %arg4[%c0_4, %c0_5] : memref<512x512xf32, #tpu.memory_space<vmem>>, vector<512x512xf32>
    %cst = arith.constant dense<0.000000e+00> : vector<16x512xf32>
    %6 = tpu.matmul %4, %5, %cst {dimension_numbers = #tpu.dot_dimension_numbers<[1], [0], [0], [1], [0, 0, 1, 1], [], []>} : vector<16x512xf32>, vector<512x512xf32>, vector<16x512xf32> -> vector<16x512xf32>
    %7 = arith.addf %3, %6 : vector<16x512xf32>
    %c0_6 = arith.constant 0 : index
    %c0_7 = arith.constant 0 : index
    %8 = vector.load %arg6[%c0_6, %c0_7] : memref<16x512xf32, #tpu.memory_space<vmem>>, vector<16x512xf32>
    tpu.vector_store %arg6[%c0_6, %c0_7], %7 {strides = array<i32>} : memref<16x512xf32, #tpu.memory_space<vmem>>, vector<16x512xf32>,
    %c0_i32_8 = arith.constant 0 : i32
    %9 = arith.cmpi eq, %arg2, %c0_i32_8 : i32
    %10 = arith.extui %9 : i1 to i32
    %c0_i32_9 = arith.constant 0 : i32
    %11 = arith.cmpi ne, %10, %c0_i32_9 : i32
    scf.if %11 {
      %c0_10 = arith.constant 0 : index
      %c0_11 = arith.constant 0 : index
      %12 = vector.load %arg6[%c0_10, %c0_11] : memref<16x512xf32, #tpu.memory_space<vmem>>, vector<16x512xf32>
      %c0_12 = arith.constant 0 : index
      %c0_13 = arith.constant 0 : index
      %13 = vector.load %arg5[%c0_12, %c0_13] : memref<16x512xf32, #tpu.memory_space<vmem>>, vector<16x512xf32>
      tpu.vector_store %arg5[%c0_12, %c0_13], %12 {strides = array<i32>} : memref<16x512xf32, #tpu.memory_space<vmem>>, vector<16x512xf32>,
    } else {
    }
    return
  }
  func.func @transform_0(%arg0: i32, %arg1: i32, %arg2: i32) -> (i32, i32) {
    %c0_i32 = arith.constant 0 : i32
    return %arg0, %arg2 : i32, i32
  }
  func.func @transform_1(%arg0: i32, %arg1: i32, %arg2: i32) -> (i32, i32) {
    %c0_i32 = arith.constant 0 : i32
    return %arg2, %arg1 : i32, i32
  }
  func.func @transform_2(%arg0: i32, %arg1: i32, %arg2: i32) -> (i32, i32) {
    %c0_i32 = arith.constant 0 : i32
    return %arg0, %arg1 : i32, i32
  }
}

</mosaic_0001>

<llo_original>
// kernel: tpu_custom_call.1
$region0: #{tpu_custom_call.1}
  #allocation0 [shape = 'u32[]', space=smem, size = 0x4, offset = 0x4, fixed_abs, tag = 'smem constant byte address 0x4 - core index']
  #allocation1 [shape = 'u32[72,128]{1,0:T(1,128)}', space=vmem, size = 0x9000, scoped, tag = 'internal scratch']
  #allocation2 [shape = 'f32[16,512]{1,0:T(8,128)}', space=vmem, size = 0x8000, scoped, tag = 'scratch operand']
  %s0 = inlined_call_operand.hbm [shape: f32[16,512], index: 0, kind: input, shape index: {}]
  %s1 = inlined_call_operand.hbm [shape: f32[512,1024], index: 1, kind: input, shape index: {}]
  %s2 = inlined_call_operand.hbm [shape: f32[16,1024], index: 2, kind: output, shape index: {}]
  %s3 = sld [smem:[#allocation0]]
  $region57: #{tpu_custom_call.1} parent=0
    _
  %s5 = ssub.s32 1, %s3
  %s6 = scalar_select 0, %s5, %s3
  $region1: #{tpu_custom_call.1} parent=0
    #allocation3 [shape = 'u8[32768]{0}', space=vmem, size = 0x8000, scoped, tag = 'input window, operand 0, single buffered']
    #allocation4 [shape = 's32[2]{0}', space=sflag, size = 0x8, scoped, tag = 'scoped memory for tpu_custom_call.1']
    #allocation5 [shape = 's32[2]{0}', space=sflag, size = 0x8, scoped, tag = 'scoped memory for tpu_custom_call.1']
    #allocation6 [shape = 'u8[2097152]{0}', space=vmem, size = 0x200000, scoped, tag = 'input window, operand 1']
    #allocation7 [shape = 's32[2]{0}', space=sflag, size = 0x8, scoped, tag = 'scoped memory for tpu_custom_call.1']
    #allocation8 [shape = 'u8[65536]{0}', space=vmem, size = 0x10000, scoped, tag = 'output window, operand 0']
    %7 = vsyncpa [#allocation4], 0
    %8 = vsyncpa [#allocation7], 0
    %s9 = scalar_lea.sflag [#allocation7], 1
    %10 = vsyncpa %s9, 0
    %11 = vsyncpa [#allocation5], 0
    %s12 = scalar_lea.sflag [#allocation5], 1
    %13 = vsyncpa %s12, 0
    loop: start=0, step=1, limit=4
    $region2: #{tpu_custom_call.1} parent=1 // loop_pre_header
      _
    $region3: #{tpu_custom_call.1} parent=1 // loop_header
      %s15 = sphi 0, %s19
      %p16 = scmp.ge.s32.totalorder %s15, 4
      %s22 = sphi 0, %s41
      %s23 = sphi 0, %s37
      %s24 = sphi 0, %s33
      %s25 = sphi 0, %s22
      %s26 = sphi 0, %s23
      %s27 = sphi 0, %s24
      %s28 = sphi 0, %s25
      %s29 = sphi 0, %s26
      %s30 = sphi 0, %s27
      %s46 = sphi 0, %s48
      %s49 = sphi 0, %s46
      %s50 = sphi 0, %s49
      %s66 = sphi 0, %s50
      %s74 = sphi 0, %s76
      %s77 = sphi 0, %s74
      %s78 = sphi 0, %s77
      %s94 = sphi 0, %s78
      %s102 = sphi 0, %s104
      %s105 = sphi 0, %s102
      %s106 = sphi 0, %s105
      %s122 = sphi 0, %s106
    $region4: #{tpu_custom_call.1} parent=1 // loop_header_branch
      %18 = sbr.rel (%p16) target = $region8
    $region5: #{tpu_custom_call.1} parent=1 // loop_body
      %s20 = ssub.s32 %s15, 1
      %s21 = ssub.s32 %s15, 2
      %s31 = sadd.s32 1, %s24
      %p32 = scmp.ge.s32.totalorder %s31, 1
      %s33 = scalar_select %p32, 0, %s31
      %s34 = sadd.s32 1, %s23
      %s35 = scalar_select %p32, %s34, %s23
      %p36 = scmp.ge.s32.totalorder %s35, 2
      %s37 = scalar_select %p36, 0, %s35
      %s38 = sadd.s32 1, %s22
      %s39 = scalar_select %p36, %s38, %s22
      %p40 = scmp.ge.s32.totalorder %s39, 1
      %s41 = scalar_select %p40, 0, %s39
      %s42 = ssub.s32 %s22, %s41
      %s43 = ssub.s32 %s24, %s33
      %s44 = sor.u32 %s42, %s43
      %p45 = scmp.eq.s32.totalorder %s44, 0
      %s47 = sadd.s32 %s46, 1
      %s48 = scalar_select %p45, %s46, %s47
      %p51 = pneg %p45
      %p52 = scmp.eq.s32.totalorder %s15, 1
      %p53 = por %p51, %p52
      %p54 = scmp.ne.s32.totalorder %s46, %s49
      %p55 = scmp.eq.s32.totalorder %s15, 0
      %p56 = por %p54, %p55
      %p57 = scmp.ne.s32.totalorder %s46, %s49
      %p58 = scmp.eq.s32.totalorder %s20, 1
      %p59 = por %p57, %p58
      %p60 = scmp.ne.s32.totalorder %s49, %s50
      %p61 = scmp.eq.s32.totalorder %s20, 0
      %p62 = por %p60, %p61
      %p63 = scmp.ne.s32.totalorder %s49, %s50
      %p64 = scmp.eq.s32.totalorder %s21, 1
      %p65 = por %p63, %p64
      %p67 = scmp.ne.s32.totalorder %s50, %s66
      %p68 = scmp.eq.s32.totalorder %s21, 0
      %p69 = por %p67, %p68
      %s70 = ssub.s32 %s24, %s33
      %s71 = ssub.s32 %s23, %s37
      %s72 = sor.u32 %s70, %s71
      %p73 = scmp.eq.s32.totalorder %s72, 0
      %s75 = sadd.s32 %s74, 1
      %s76 = scalar_select %p73, %s74, %s75
      %p79 = pneg %p73
      %p80 = scmp.eq.s32.totalorder %s15, 1
      %p81 = por %p79, %p80
      %p82 = scmp.ne.s32.totalorder %s74, %s77
      %p83 = scmp.eq.s32.totalorder %s15, 0
      %p84 = por %p82, %p83
      %p85 = scmp.ne.s32.totalorder %s74, %s77
      %p86 = scmp.eq.s32.totalorder %s20, 1
      %p87 = por %p85, %p86
      %p88 = scmp.ne.s32.totalorder %s77, %s78
      %p89 = scmp.eq.s32.totalorder %s20, 0
      %p90 = por %p88, %p89
      %p91 = scmp.ne.s32.totalorder %s77, %s78
      %p92 = scmp.eq.s32.totalorder %s21, 1
      %p93 = por %p91, %p92
      %p95 = scmp.ne.s32.totalorder %s78, %s94
      %p96 = scmp.eq.s32.totalorder %s21, 0
      %p97 = por %p95, %p96
      %s98 = ssub.s32 %s22, %s41
      %s99 = ssub.s32 %s23, %s37
      %s100 = sor.u32 %s98, %s99
      %p101 = scmp.eq.s32.totalorder %s100, 0
      %s103 = sadd.s32 %s102, 1
      %s104 = scalar_select %p101, %s102, %s103
      %p107 = pneg %p101
      %p108 = scmp.eq.s32.totalorder %s15, 1
      %p109 = por %p107, %p108
      %p110 = scmp.ne.s32.totalorder %s102, %s105
      %p111 = scmp.eq.s32.totalorder %s15, 0
      %p112 = por %p110, %p111
      %p113 = scmp.ne.s32.totalorder %s102, %s105
      %p114 = scmp.eq.s32.totalorder %s20, 1
      %p115 = por %p113, %p114
      %p116 = scmp.ne.s32.totalorder %s105, %s106
      %p117 = scmp.eq.s32.totalorder %s20, 0
      %p118 = por %p116, %p117
      %p119 = scmp.ne.s32.totalorder %s105, %s106
      %p120 = scmp.eq.s32.totalorder %s21, 1
      %p121 = por %p119, %p120
      %p123 = scmp.ne.s32.totalorder %s106, %s122
      %p124 = scmp.eq.s32.totalorder %s21, 0
      %p125 = por %p123, %p124
      %p126 = scmp.le.s32.totalorder 1, %s15
      %p127 = scmp.lt.s32.totalorder %s15, 3
      %p128 = pnand %p126, %p127
      %p129 = pneg %p128
      // Predicated region
      $region9: #{tpu_custom_call.1} parent=5 // pred_check
        _
      $region10: #{tpu_custom_call.1} parent=5 // pred_check_branch
        %131 = sbr.rel (%p128) target = $region12
      $region11: #{tpu_custom_call.1} parent=5 // pred_region
        %s132 = ssub.s32 %s15, 1
        // Predicated region
        $region13: #{tpu_custom_call.1} parent=11 // pred_check
          %p133 = pneg %p62
        $region14: #{tpu_custom_call.1} parent=11 // pred_check_branch
          %135 = sbr.rel (%p133) target = $region16
        $region15: #{tpu_custom_call.1} parent=11 // pred_region
          %s136 = smul.u32 2, %s25
          %s137 = smul.u32 4, %s27
          %139 = vsyncadd [#allocation4], 0
          %s140 = smul.addr %s136, 4
          %s141 = sadd.s32 %s137, %s140
          %s142 = smul.addr %s141, 8
          %s143 = scalar_lea.hbm %s0, %s142
          %s144 = sshll.u32 %s143, 4
          %s145 = int_to_ptr.hbm [resolvable:$true] %s144
          %s146 = sshll.u32 [#allocation3], 4
          %s147 = int_to_ptr.vmem [resolvable:$true] %s146
          %152 = dma.hbm_to_vmem [thread:$0]  %s145, 1024, %s147, [#allocation4], 512, 512, 32
        $region16: #{tpu_custom_call.1} parent=11 // pred_fallthru
          _
      $region12: #{tpu_custom_call.1} parent=5 // pred_fallthru
        _
      %p153 = scmp.lt.s32.totalorder %s15, 2
      // Predicated region
      $region17: #{tpu_custom_call.1} parent=5 // pred_check
        %p154 = pneg %p153
      $region18: #{tpu_custom_call.1} parent=5 // pred_check_branch
        %156 = sbr.rel (%p154) target = $region20
      $region19: #{tpu_custom_call.1} parent=5 // pred_region
        // Predicated region
        $region21: #{tpu_custom_call.1} parent=19 // pred_check
          %p157 = pneg %p84
        $region22: #{tpu_custom_call.1} parent=19 // pred_check_branch
          %159 = sbr.rel (%p157) target = $region24
        $region23: #{tpu_custom_call.1} parent=19 // pred_region
          %s160 = sand.u32 %s74, 1
          %s161 = scalar_lea.sflag [#allocation7], %s160
          %s162 = sand.u32 %s74, 1
          %s163 = smul.addr %s162, 2048
          %s164 = scalar_lea.vmem [#allocation6], %s163
          %s165 = smul.u32 64, %s24
          %s166 = smul.u32 4, %s23
          %168 = vsyncadd %s161, 0
          %s169 = smul.addr %s165, 8
          %s170 = sadd.s32 %s166, %s169
          %s171 = smul.addr %s170, 8
          %s172 = scalar_lea.hbm %s1, %s171
          %s173 = sshll.u32 %s172, 4
          %s174 = int_to_ptr.hbm [resolvable:$true] %s173
          %s175 = sshll.u32 %s164, 4
          %s176 = int_to_ptr.vmem [resolvable:$true] %s175
          %181 = dma.hbm_to_vmem [thread:$0]  %s174, 32768, %s176, %s161, 1024, 512, 32
        $region24: #{tpu_custom_call.1} parent=19 // pred_fallthru
          _
      $region20: #{tpu_custom_call.1} parent=5 // pred_fallthru
        _
      %p182 = scmp.le.s32.totalorder 1, %s15
      %p183 = scmp.lt.s32.totalorder %s15, 3
      %p184 = pnand %p182, %p183
      %p185 = pneg %p184
      // Predicated region
      $region25: #{tpu_custom_call.1} parent=5 // pred_check
        _
      $region26: #{tpu_custom_call.1} parent=5 // pred_check_branch
        %187 = sbr.rel (%p184) target = $region28
      $region27: #{tpu_custom_call.1} parent=5 // pred_region
        %s188 = ssub.s32 %s15, 1
        // Predicated region
        $region29: #{tpu_custom_call.1} parent=27 // pred_check
          %p189 = pneg %p62
        $region30: #{tpu_custom_call.1} parent=27 // pred_check_branch
          %191 = sbr.rel (%p189) target = $region32
        $region31: #{tpu_custom_call.1} parent=27 // pred_region
          %193 = dma.done [#allocation4], 1024
        $region32: #{tpu_custom_call.1} parent=27 // pred_fallthru
          _
        %s194 = sand.u32 %s77, 1
        %s195 = scalar_lea.sflag [#allocation7], %s194
        %s196 = sand.u32 %s77, 1
        %s197 = smul.addr %s196, 2048
        %s198 = scalar_lea.vmem [#allocation6], %s197
        // Predicated region
        $region33: #{tpu_custom_call.1} parent=27 // pred_check
          %p199 = pneg %p90
        $region34: #{tpu_custom_call.1} parent=27 // pred_check_branch
          %201 = sbr.rel (%p199) target = $region36
        $region35: #{tpu_custom_call.1} parent=27 // pred_region
          %203 = dma.done %s195, 32768
        $region36: #{tpu_custom_call.1} parent=27 // pred_fallthru
          _
        %p204 = pneg %p62
        %p205 = pneg %p59
        %s206 = sand.u32 %s77, 1
        %s207 = scalar_lea.sflag [#allocation7], %s206
        %s208 = sand.u32 %s77, 1
        %s209 = smul.addr %s208, 2048
        %s210 = scalar_lea.vmem [#allocation6], %s209
        %p211 = pneg %p90
        %p212 = pneg %p87
        %p213 = pneg %p118
        %p214 = pneg %p115
        %s215 = sand.u32 %s105, 1
        %s216 = scalar_lea.sflag [#allocation5], %s215
        %s217 = sand.u32 %s105, 1
        %s218 = smul.addr %s217, 64
        %s219 = scalar_lea.vmem [#allocation8], %s218
        %s220 = smul.u32 2, %s25
        %s221 = smul.u32 4, %s27
        %s222 = smul.u32 64, %s27
        %s223 = smul.u32 4, %s26
        %s224 = smul.u32 2, %s25
        %s225 = smul.u32 4, %s26
        %p226 = scmp.eq.s32.totalorder %s27, 0
        // Predicated region
        $region37: #{tpu_custom_call.1} parent=27 // pred_check
          %p227 = pneg %p226
        $region38: #{tpu_custom_call.1} parent=27 // pred_check_branch
          %229 = sbr.rel (%p227) target = $region40
        $region39: #{tpu_custom_call.1} parent=27 // pred_region
          %230 = vst [vmem:[#allocation2] sm:$0xff] 0.0
          %231 = vst [vmem:[#allocation2 + $0x8] sm:$0xff] 0.0
          %232 = vst [vmem:[#allocation2 + $0x10] sm:$0xff] 0.0
          %233 = vst [vmem:[#allocation2 + $0x18] sm:$0xff] 0.0
          %234 = vst [vmem:[#allocation2 + $0x20] sm:$0xff] 0.0
          %235 = vst [vmem:[#allocation2 + $0x28] sm:$0xff] 0.0
          %236 = vst [vmem:[#allocation2 + $0x30] sm:$0xff] 0.0
          %237 = vst [vmem:[#allocation2 + $0x38] sm:$0xff] 0.0
        $region40: #{tpu_custom_call.1} parent=27 // pred_fallthru
          _
        %v238 = vld [vmem:[#allocation2] sm:$0xff]
        %v239 = vld [vmem:[#allocation2 + $0x8] sm:$0xff]
        %v240 = vld [vmem:[#allocation2 + $0x10] sm:$0xff]
        %v241 = vld [vmem:[#allocation2 + $0x18] sm:$0xff]
        %v242 = vld [vmem:[#allocation2 + $0x20] sm:$0xff]
        %v243 = vld [vmem:[#allocation2 + $0x28] sm:$0xff]
        %v244 = vld [vmem:[#allocation2 + $0x30] sm:$0xff]
        %v245 = vld [vmem:[#allocation2 + $0x38] sm:$0xff]
        %v246 = vld [vmem:[#allocation3] sm:$0xff]
        %v247 = vld [vmem:[#allocation3 + $0x8] sm:$0xff]
        %v248 = vld [vmem:[#allocation3 + $0x10] sm:$0xff]
        %v249 = vld [vmem:[#allocation3 + $0x18] sm:$0xff]
        %v250 = vld [vmem:[#allocation3 + $0x20] sm:$0xff]
        %v251 = vld [vmem:[#allocation3 + $0x28] sm:$0xff]
        %v252 = vld [vmem:[#allocation3 + $0x30] sm:$0xff]
        %v253 = vld [vmem:[#allocation3 + $0x38] sm:$0xff]
        %v254 = vld [vmem:[%s198] sm:$0xff]
        %v255 = vld [vmem:[%s198 + $0x8] sm:$0xff]
        %v256 = vld [vmem:[%s198 + $0x10] sm:$0xff]
        %v257 = vld [vmem:[%s198 + $0x18] sm:$0xff]
        %v258 = vld [vmem:[%s198 + $0x20] sm:$0xff]
        %v259 = vld [vmem:[%s198 + $0x28] sm:$0xff]
        %v260 = vld [vmem:[%s198 + $0x30] sm:$0xff]
        %v261 = vld [vmem:[%s198 + $0x38] sm:$0xff]
        %v262 = vld [vmem:[%s198 + $0x40] sm:$0xff]
        %v263 = vld [vmem:[%s198 + $0x48] sm:$0xff]
        %v264 = vld [vmem:[%s198 + $0x50] sm:$0xff]
        %v265 = vld [vmem:[%s198 + $0x58] sm:$0xff]
        %v266 = vld [vmem:[%s198 + $0x60] sm:$0xff]
        %v267 = vld [vmem:[%s198 + $0x68] sm:$0xff]
        %v268 = vld [vmem:[%s198 + $0x70] sm:$0xff]
        %v269 = vld [vmem:[%s198 + $0x78] sm:$0xff]
        %v270 = vld [vmem:[%s198 + $0x80] sm:$0xff]
        %v271 = vld [vmem:[%s198 + $0x88] sm:$0xff]
        %v272 = vld [vmem:[%s198 + $0x90] sm:$0xff]
        %v273 = vld [vmem:[%s198 + $0x98] sm:$0xff]
        %v274 = vld [vmem:[%s198 + $0xa0] sm:$0xff]
        %v275 = vld [vmem:[%s198 + $0xa8] sm:$0xff]
        %v276 = vld [vmem:[%s198 + $0xb0] sm:$0xff]
        %v277 = vld [vmem:[%s198 + $0xb8] sm:$0xff]
        %v278 = vld [vmem:[%s198 + $0xc0] sm:$0xff]
        %v279 = vld [vmem:[%s198 + $0xc8] sm:$0xff]
        %v280 = vld [vmem:[%s198 + $0xd0] sm:$0xff]
        %v281 = vld [vmem:[%s198 + $0xd8] sm:$0xff]
        %v282 = vld [vmem:[%s198 + $0xe0] sm:$0xff]
        %v283 = vld [vmem:[%s198 + $0xe8] sm:$0xff]
        %v284 = vld [vmem:[%s198 + $0xf0] sm:$0xff]
        %v285 = vld [vmem:[%s198 + $0xf8] sm:$0xff]
        %v286 = vld [vmem:[%s198 + $0x100] sm:$0xff]
        %v287 = vld [vmem:[%s198 + $0x108] sm:$0xff]
        %v288 = vld [vmem:[%s198 + $0x110] sm:$0xff]
        %v289 = vld [vmem:[%s198 + $0x118] sm:$0xff]
        %v290 = vld [vmem:[%s198 + $0x120] sm:$0xff]
        %v291 = vld [vmem:[%s198 + $0x128] sm:$0xff]
        %v292 = vld [vmem:[%s198 + $0x130] sm:$0xff]
        %v293 = vld [vmem:[%s198 + $0x138] sm:$0xff]
        %v294 = vld [vmem:[%s198 + $0x140] sm:$0xff]
        %v295 = vld [vmem:[%s198 + $0x148] sm:$0xff]
        %v296 = vld [vmem:[%s198 + $0x150] sm:$0xff]
        %v297 = vld [vmem:[%s198 + $0x158] sm:$0xff]
        %v298 = vld [vmem:[%s198 + $0x160] sm:$0xff]
        %v299 = vld [vmem:[%s198 + $0x168] sm:$0xff]
        %v300 = vld [vmem:[%s198 + $0x170] sm:$0xff]
        %v301 = vld [vmem:[%s198 + $0x178] sm:$0xff]
        %v302 = vld [vmem:[%s198 + $0x180] sm:$0xff]
        %v303 = vld [vmem:[%s198 + $0x188] sm:$0xff]
        %v304 = vld [vmem:[%s198 + $0x190] sm:$0xff]
        %v305 = vld [vmem:[%s198 + $0x198] sm:$0xff]
        %v306 = vld [vmem:[%s198 + $0x1a0] sm:$0xff]
        %v307 = vld [vmem:[%s198 + $0x1a8] sm:$0xff]
        %v308 = vld [vmem:[%s198 + $0x1b0] sm:$0xff]
        %v309 = vld [vmem:[%s198 + $0x1b8] sm:$0xff]
        %v310 = vld [vmem:[%s198 + $0x1c0] sm:$0xff]
        %v311 = vld [vmem:[%s198 + $0x1c8] sm:$0xff]
        %v312 = vld [vmem:[%s198 + $0x1d0] sm:$0xff]
        %v313 = vld [vmem:[%s198 + $0x1d8] sm:$0xff]
        %v314 = vld [vmem:[%s198 + $0x1e0] sm:$0xff]
        %v315 = vld [vmem:[%s198 + $0x1e8] sm:$0xff]
        %v316 = vld [vmem:[%s198 + $0x1f0] sm:$0xff]
        %v317 = vld [vmem:[%s198 + $0x1f8] sm:$0xff]
        %v318 = vld [vmem:[%s198 + $0x200] sm:$0xff]
        %v319 = vld [vmem:[%s198 + $0x208] sm:$0xff]
        %v320 = vld [vmem:[%s198 + $0x210] sm:$0xff]
        %v321 = vld [vmem:[%s198 + $0x218] sm:$0xff]
        %v322 = vld [vmem:[%s198 + $0x220] sm:$0xff]
        %v323 = vld [vmem:[%s198 + $0x228] sm:$0xff]
        %v324 = vld [vmem:[%s198 + $0x230] sm:$0xff]
        %v325 = vld [vmem:[%s198 + $0x238] sm:$0xff]
        %v326 = vld [vmem:[%s198 + $0x240] sm:$0xff]
        %v327 = vld [vmem:[%s198 + $0x248] sm:$0xff]
        %v328 = vld [vmem:[%s198 + $0x250] sm:$0xff]
        %v329 = vld [vmem:[%s198 + $0x258] sm:$0xff]
        %v330 = vld [vmem:[%s198 + $0x260] sm:$0xff]
        %v331 = vld [vmem:[%s198 + $0x268] sm:$0xff]
        %v332 = vld [vmem:[%s198 + $0x270] sm:$0xff]
        %v333 = vld [vmem:[%s198 + $0x278] sm:$0xff]
        %v334 = vld [vmem:[%s198 + $0x280] sm:$0xff]
        %v335 = vld [vmem:[%s198 + $0x288] sm:$0xff]
        %v336 = vld [vmem:[%s198 + $0x290] sm:$0xff]
        %v337 = vld [vmem:[%s198 + $0x298] sm:$0xff]
        %v338 = vld [vmem:[%s198 + $0x2a0] sm:$0xff]
        %v339 = vld [vmem:[%s198 + $0x2a8] sm:$0xff]
        %v340 = vld [vmem:[%s198 + $0x2b0] sm:$0xff]
        %v341 = vld [vmem:[%s198 + $0x2b8] sm:$0xff]
        %v342 = vld [vmem:[%s198 + $0x2c0] sm:$0xff]
        %v343 = vld [vmem:[%s198 + $0x2c8] sm:$0xff]
        %v344 = vld [vmem:[%s198 + $0x2d0] sm:$0xff]
        %v345 = vld [vmem:[%s198 + $0x2d8] sm:$0xff]
        %v346 = vld [vmem:[%s198 + $0x2e0] sm:$0xff]
        %v347 = vld [vmem:[%s198 + $0x2e8] sm:$0xff]
        %v348 = vld [vmem:[%s198 + $0x2f0] sm:$0xff]
        %v349 = vld [vmem:[%s198 + $0x2f8] sm:$0xff]
        %v350 = vld [vmem:[%s198 + $0x300] sm:$0xff]
        %v351 = vld [vmem:[%s198 + $0x308] sm:$0xff]
        %v352 = vld [vmem:[%s198 + $0x310] sm:$0xff]
        %v353 = vld [vmem:[%s198 + $0x318] sm:$0xff]
        %v354 = vld [vmem:[%s198 + $0x320] sm:$0xff]
        %v355 = vld [vmem:[%s198 + $0x328] sm:$0xff]
        %v356 = vld [vmem:[%s198 + $0x330] sm:$0xff]
        %v357 = vld [vmem:[%s198 + $0x338] sm:$0xff]
        %v358 = vld [vmem:[%s198 + $0x340] sm:$0xff]
        %v359 = vld [vmem:[%s198 + $0x348] sm:$0xff]
        %v360 = vld [vmem:[%s198 + $0x350] sm:$0xff]
        %v361 = vld [vmem:[%s198 + $0x358] sm:$0xff]
        %v362 = vld [vmem:[%s198 + $0x360] sm:$0xff]
        %v363 = vld [vmem:[%s198 + $0x368] sm:$0xff]
        %v364 = vld [vmem:[%s198 + $0x370] sm:$0xff]
        %v365 = vld [vmem:[%s198 + $0x378] sm:$0xff]
        %v366 = vld [vmem:[%s198 + $0x380] sm:$0xff]
        %v367 = vld [vmem:[%s198 + $0x388] sm:$0xff]
        %v368 = vld [vmem:[%s198 + $0x390] sm:$0xff]
        %v369 = vld [vmem:[%s198 + $0x398] sm:$0xff]
        %v370 = vld [vmem:[%s198 + $0x3a0] sm:$0xff]
        %v371 = vld [vmem:[%s198 + $0x3a8] sm:$0xff]
        %v372 = vld [vmem:[%s198 + $0x3b0] sm:$0xff]
        %v373 = vld [vmem:[%s198 + $0x3b8] sm:$0xff]
        %v374 = vld [vmem:[%s198 + $0x3c0] sm:$0xff]
        %v375 = vld [vmem:[%s198 + $0x3c8] sm:$0xff]
        %v376 = vld [vmem:[%s198 + $0x3d0] sm:$0xff]
        %v377 = vld [vmem:[%s198 + $0x3d8] sm:$0xff]
        %v378 = vld [vmem:[%s198 + $0x3e0] sm:$0xff]
        %v379 = vld [vmem:[%s198 + $0x3e8] sm:$0xff]
        %v380 = vld [vmem:[%s198 + $0x3f0] sm:$0xff]
        %v381 = vld [vmem:[%s198 + $0x3f8] sm:$0xff]
        %v382 = vld [vmem:[%s198 + $0x400] sm:$0xff]
        %v383 = vld [vmem:[%s198 + $0x408] sm:$0xff]
        %v384 = vld [vmem:[%s198 + $0x410] sm:$0xff]
        %v385 = vld [vmem:[%s198 + $0x418] sm:$0xff]
        %v386 = vld [vmem:[%s198 + $0x420] sm:$0xff]
        %v387 = vld [vmem:[%s198 + $0x428] sm:$0xff]
        %v388 = vld [vmem:[%s198 + $0x430] sm:$0xff]
        %v389 = vld [vmem:[%s198 + $0x438] sm:$0xff]
        %v390 = vld [vmem:[%s198 + $0x440] sm:$0xff]
        %v391 = vld [vmem:[%s198 + $0x448] sm:$0xff]
        %v392 = vld [vmem:[%s198 + $0x450] sm:$0xff]
        %v393 = vld [vmem:[%s198 + $0x458] sm:$0xff]
        %v394 = vld [vmem:[%s198 + $0x460] sm:$0xff]
        %v395 = vld [vmem:[%s198 + $0x468] sm:$0xff]
        %v396 = vld [vmem:[%s198 + $0x470] sm:$0xff]
        %v397 = vld [vmem:[%s198 + $0x478] sm:$0xff]
        %v398 = vld [vmem:[%s198 + $0x480] sm:$0xff]
        %v399 = vld [vmem:[%s198 + $0x488] sm:$0xff]
        %v400 = vld [vmem:[%s198 + $0x490] sm:$0xff]
        %v401 = vld [vmem:[%s198 + $0x498] sm:$0xff]
        %v402 = vld [vmem:[%s198 + $0x4a0] sm:$0xff]
        %v403 = vld [vmem:[%s198 + $0x4a8] sm:$0xff]
        %v404 = vld [vmem:[%s198 + $0x4b0] sm:$0xff]
        %v405 = vld [vmem:[%s198 + $0x4b8] sm:$0xff]
        %v406 = vld [vmem:[%s198 + $0x4c0] sm:$0xff]
        %v407 = vld [vmem:[%s198 + $0x4c8] sm:$0xff]
        %v408 = vld [vmem:[%s198 + $0x4d0] sm:$0xff]
        %v409 = vld [vmem:[%s198 + $0x4d8] sm:$0xff]
        %v410 = vld [vmem:[%s198 + $0x4e0] sm:$0xff]
        %v411 = vld [vmem:[%s198 + $0x4e8] sm:$0xff]
        %v412 = vld [vmem:[%s198 + $0x4f0] sm:$0xff]
        %v413 = vld [vmem:[%s198 + $0x4f8] sm:$0xff]
        %v414 = vld [vmem:[%s198 + $0x500] sm:$0xff]
        %v415 = vld [vmem:[%s198 + $0x508] sm:$0xff]
        %v416 = vld [vmem:[%s198 + $0x510] sm:$0xff]
        %v417 = vld [vmem:[%s198 + $0x518] sm:$0xff]
        %v418 = vld [vmem:[%s198 + $0x520] sm:$0xff]
        %v419 = vld [vmem:[%s198 + $0x528] sm:$0xff]
        %v420 = vld [vmem:[%s198 + $0x530] sm:$0xff]
        %v421 = vld [vmem:[%s198 + $0x538] sm:$0xff]
        %v422 = vld [vmem:[%s198 + $0x540] sm:$0xff]
        %v423 = vld [vmem:[%s198 + $0x548] sm:$0xff]
        %v424 = vld [vmem:[%s198 + $0x550] sm:$0xff]
        %v425 = vld [vmem:[%s198 + $0x558] sm:$0xff]
        %v426 = vld [vmem:[%s198 + $0x560] sm:$0xff]
        %v427 = vld [vmem:[%s198 + $0x568] sm:$0xff]
        %v428 = vld [vmem:[%s198 + $0x570] sm:$0xff]
        %v429 = vld [vmem:[%s198 + $0x578] sm:$0xff]
        %v430 = vld [vmem:[%s198 + $0x580] sm:$0xff]
        %v431 = vld [vmem:[%s198 + $0x588] sm:$0xff]
        %v432 = vld [vmem:[%s198 + $0x590] sm:$0xff]
        %v433 = vld [vmem:[%s198 + $0x598] sm:$0xff]
        %v434 = vld [vmem:[%s198 + $0x5a0] sm:$0xff]
        %v435 = vld [vmem:[%s198 + $0x5a8] sm:$0xff]
        %v436 = vld [vmem:[%s198 + $0x5b0] sm:$0xff]
        %v437 = vld [vmem:[%s198 + $0x5b8] sm:$0xff]
        %v438 = vld [vmem:[%s198 + $0x5c0] sm:$0xff]
        %v439 = vld [vmem:[%s198 + $0x5c8] sm:$0xff]
        %v440 = vld [vmem:[%s198 + $0x5d0] sm:$0xff]
        %v441 = vld [vmem:[%s198 + $0x5d8] sm:$0xff]
        %v442 = vld [vmem:[%s198 + $0x5e0] sm:$0xff]
        %v443 = vld [vmem:[%s198 + $0x5e8] sm:$0xff]
        %v444 = vld [vmem:[%s198 + $0x5f0] sm:$0xff]
        %v445 = vld [vmem:[%s198 + $0x5f8] sm:$0xff]
        %v446 = vld [vmem:[%s198 + $0x600] sm:$0xff]
        %v447 = vld [vmem:[%s198 + $0x608] sm:$0xff]
        %v448 = vld [vmem:[%s198 + $0x610] sm:$0xff]
        %v449 = vld [vmem:[%s198 + $0x618] sm:$0xff]
        %v450 = vld [vmem:[%s198 + $0x620] sm:$0xff]
        %v451 = vld [vmem:[%s198 + $0x628] sm:$0xff]
        %v452 = vld [vmem:[%s198 + $0x630] sm:$0xff]
        %v453 = vld [vmem:[%s198 + $0x638] sm:$0xff]
        %v454 = vld [vmem:[%s198 + $0x640] sm:$0xff]
        %v455 = vld [vmem:[%s198 + $0x648] sm:$0xff]
        %v456 = vld [vmem:[%s198 + $0x650] sm:$0xff]
        %v457 = vld [vmem:[%s198 + $0x658] sm:$0xff]
        %v458 = vld [vmem:[%s198 + $0x660] sm:$0xff]
        %v459 = vld [vmem:[%s198 + $0x668] sm:$0xff]
        %v460 = vld [vmem:[%s198 + $0x670] sm:$0xff]
        %v461 = vld [vmem:[%s198 + $0x678] sm:$0xff]
        %v462 = vld [vmem:[%s198 + $0x680] sm:$0xff]
        %v463 = vld [vmem:[%s198 + $0x688] sm:$0xff]
        %v464 = vld [vmem:[%s198 + $0x690] sm:$0xff]
        %v465 = vld [vmem:[%s198 + $0x698] sm:$0xff]
        %v466 = vld [vmem:[%s198 + $0x6a0] sm:$0xff]
        %v467 = vld [vmem:[%s198 + $0x6a8] sm:$0xff]
        %v468 = vld [vmem:[%s198 + $0x6b0] sm:$0xff]
        %v469 = vld [vmem:[%s198 + $0x6b8] sm:$0xff]
        %v470 = vld [vmem:[%s198 + $0x6c0] sm:$0xff]
        %v471 = vld [vmem:[%s198 + $0x6c8] sm:$0xff]
        %v472 = vld [vmem:[%s198 + $0x6d0] sm:$0xff]
        %v473 = vld [vmem:[%s198 + $0x6d8] sm:$0xff]
        %v474 = vld [vmem:[%s198 + $0x6e0] sm:$0xff]
        %v475 = vld [vmem:[%s198 + $0x6e8] sm:$0xff]
        %v476 = vld [vmem:[%s198 + $0x6f0] sm:$0xff]
        %v477 = vld [vmem:[%s198 + $0x6f8] sm:$0xff]
        %v478 = vld [vmem:[%s198 + $0x700] sm:$0xff]
        %v479 = vld [vmem:[%s198 + $0x708] sm:$0xff]
        %v480 = vld [vmem:[%s198 + $0x710] sm:$0xff]
        %v481 = vld [vmem:[%s198 + $0x718] sm:$0xff]
        %v482 = vld [vmem:[%s198 + $0x720] sm:$0xff]
        %v483 = vld [vmem:[%s198 + $0x728] sm:$0xff]
        %v484 = vld [vmem:[%s198 + $0x730] sm:$0xff]
        %v485 = vld [vmem:[%s198 + $0x738] sm:$0xff]
        %v486 = vld [vmem:[%s198 + $0x740] sm:$0xff]
        %v487 = vld [vmem:[%s198 + $0x748] sm:$0xff]
        %v488 = vld [vmem:[%s198 + $0x750] sm:$0xff]
        %v489 = vld [vmem:[%s198 + $0x758] sm:$0xff]
        %v490 = vld [vmem:[%s198 + $0x760] sm:$0xff]
        %v491 = vld [vmem:[%s198 + $0x768] sm:$0xff]
        %v492 = vld [vmem:[%s198 + $0x770] sm:$0xff]
        %v493 = vld [vmem:[%s198 + $0x778] sm:$0xff]
        %v494 = vld [vmem:[%s198 + $0x780] sm:$0xff]
        %v495 = vld [vmem:[%s198 + $0x788] sm:$0xff]
        %v496 = vld [vmem:[%s198 + $0x790] sm:$0xff]
        %v497 = vld [vmem:[%s198 + $0x798] sm:$0xff]
        %v498 = vld [vmem:[%s198 + $0x7a0] sm:$0xff]
        %v499 = vld [vmem:[%s198 + $0x7a8] sm:$0xff]
        %v500 = vld [vmem:[%s198 + $0x7b0] sm:$0xff]
        %v501 = vld [vmem:[%s198 + $0x7b8] sm:$0xff]
        %v502 = vld [vmem:[%s198 + $0x7c0] sm:$0xff]
        %v503 = vld [vmem:[%s198 + $0x7c8] sm:$0xff]
        %v504 = vld [vmem:[%s198 + $0x7d0] sm:$0xff]
        %v505 = vld [vmem:[%s198 + $0x7d8] sm:$0xff]
        %v506 = vld [vmem:[%s198 + $0x7e0] sm:$0xff]
        %v507 = vld [vmem:[%s198 + $0x7e8] sm:$0xff]
        %v508 = vld [vmem:[%s198 + $0x7f0] sm:$0xff]
        %v509 = vld [vmem:[%s198 + $0x7f8] sm:$0xff]
        %510 = vmatpush.msra.mxu0 %v314
        %511 = vmatpush.msra.mxu0 %v310
        %512 = vmatpush.msra.mxu0 %v306
        %513 = vmatpush.msra.mxu0 %v302
        %514 = vmatpush.msra.mxu0 %v298
        %515 = vmatpush.msra.mxu0 %v294
        %516 = vmatpush.msra.mxu0 %v290
        %517 = vmatpush.msra.mxu0 %v286
        %518 = vmatpush.msra.mxu0 %v282
        %519 = vmatpush.msra.mxu0 %v278
        %520 = vmatpush.msra.mxu0 %v274
        %521 = vmatpush.msra.mxu0 %v270
        %522 = vmatpush.msra.mxu0 %v266
        %523 = vmatpush.msra.mxu0 %v262
        %524 = vmatpush.msra.mxu0 %v258
        %525 = vmatpush.msra.mxu0 %v254
        %526 = vmatmul.f32.gmra.mxu0 %v246
        %v527 = vpop.f32.mrf.mxu0
        %v528 = vadd.f32 0.0, %v527
        %529 = vmatmul.f32.gmra.mxu0 %v250
        %v530 = vpop.f32.mrf.mxu0
        %v531 = vadd.f32 0.0, %v530
        %532 = vdwg.mxu0
        %533 = vmatpush.msra.mxu0 %v378
        %534 = vmatpush.msra.mxu0 %v374
        %535 = vmatpush.msra.mxu0 %v370
        %536 = vmatpush.msra.mxu0 %v366
        %537 = vmatpush.msra.mxu0 %v362
        %538 = vmatpush.msra.mxu0 %v358
        %539 = vmatpush.msra.mxu0 %v354
        %540 = vmatpush.msra.mxu0 %v350
        %541 = vmatpush.msra.mxu0 %v346
        %542 = vmatpush.msra.mxu0 %v342
        %543 = vmatpush.msra.mxu0 %v338
        %544 = vmatpush.msra.mxu0 %v334
        %545 = vmatpush.msra.mxu0 %v330
        %546 = vmatpush.msra.mxu0 %v326
        %547 = vmatpush.msra.mxu0 %v322
        %548 = vmatpush.msra.mxu0 %v318
        %549 = vmatmul.f32.gmra.mxu0 %v247
        %v550 = vpop.f32.mrf.mxu0
        %v551 = vadd.f32 %v528, %v550
        %552 = vmatmul.f32.gmra.mxu0 %v251
        %v553 = vpop.f32.mrf.mxu0
        %v554 = vadd.f32 %v531, %v553
        %555 = vdwg.mxu0
        %556 = vmatpush.msra.mxu0 %v442
        %557 = vmatpush.msra.mxu0 %v438
        %558 = vmatpush.msra.mxu0 %v434
        %559 = vmatpush.msra.mxu0 %v430
        %560 = vmatpush.msra.mxu0 %v426
        %561 = vmatpush.msra.mxu0 %v422
        %562 = vmatpush.msra.mxu0 %v418
        %563 = vmatpush.msra.mxu0 %v414
        %564 = vmatpush.msra.mxu0 %v410
        %565 = vmatpush.msra.mxu0 %v406
        %566 = vmatpush.msra.mxu0 %v402
        %567 = vmatpush.msra.mxu0 %v398
        %568 = vmatpush.msra.mxu0 %v394
        %569 = vmatpush.msra.mxu0 %v390
        %570 = vmatpush.msra.mxu0 %v386
        %571 = vmatpush.msra.mxu0 %v382
        %572 = vmatmul.f32.gmra.mxu0 %v248
        %v573 = vpop.f32.mrf.mxu0
        %v574 = vadd.f32 %v551, %v573
        %575 = vmatmul.f32.gmra.mxu0 %v252
        %v576 = vpop.f32.mrf.mxu0
        %v577 = vadd.f32 %v554, %v576
        %578 = vdwg.mxu0
        %579 = vmatpush.msra.mxu0 %v506
        %580 = vmatpush.msra.mxu0 %v502
        %581 = vmatpush.msra.mxu0 %v498
        %582 = vmatpush.msra.mxu0 %v494
        %583 = vmatpush.msra.mxu0 %v490
        %584 = vmatpush.msra.mxu0 %v486
        %585 = vmatpush.msra.mxu0 %v482
        %586 = vmatpush.msra.mxu0 %v478
        %587 = vmatpush.msra.mxu0 %v474
        %588 = vmatpush.msra.mxu0 %v470
        %589 = vmatpush.msra.mxu0 %v466
        %590 = vmatpush.msra.mxu0 %v462
        %591 = vmatpush.msra.mxu0 %v458
        %592 = vmatpush.msra.mxu0 %v454
        %593 = vmatpush.msra.mxu0 %v450
        %594 = vmatpush.msra.mxu0 %v446
        %595 = vmatmul.f32.gmra.mxu0 %v249
        %v596 = vpop.f32.mrf.mxu0
        %v597 = vadd.f32 %v574, %v596
        %598 = vmatmul.f32.gmra.mxu0 %v253
        %v599 = vpop.f32.mrf.mxu0
        %v600 = vadd.f32 %v577, %v599
        %601 = vdwg.mxu0
        %602 = vmatpush.msra.mxu0 %v315
        %603 = vmatpush.msra.mxu0 %v311
        %604 = vmatpush.msra.mxu0 %v307
        %605 = vmatpush.msra.mxu0 %v303
        %606 = vmatpush.msra.mxu0 %v299
        %607 = vmatpush.msra.mxu0 %v295
        %608 = vmatpush.msra.mxu0 %v291
        %609 = vmatpush.msra.mxu0 %v287
        %610 = vmatpush.msra.mxu0 %v283
        %611 = vmatpush.msra.mxu0 %v279
        %612 = vmatpush.msra.mxu0 %v275
        %613 = vmatpush.msra.mxu0 %v271
        %614 = vmatpush.msra.mxu0 %v267
        %615 = vmatpush.msra.mxu0 %v263
        %616 = vmatpush.msra.mxu0 %v259
        %617 = vmatpush.msra.mxu0 %v255
        %618 = vmatmul.f32.gmra.mxu0 %v246
        %v619 = vpop.f32.mrf.mxu0
        %v620 = vadd.f32 0.0, %v619
        %621 = vmatmul.f32.gmra.mxu0 %v250
        %v622 = vpop.f32.mrf.mxu0
        %v623 = vadd.f32 0.0, %v622
        %624 = vdwg.mxu0
        %625 = vmatpush.msra.mxu0 %v379
        %626 = vmatpush.msra.mxu0 %v375
        %627 = vmatpush.msra.mxu0 %v371
        %628 = vmatpush.msra.mxu0 %v367
        %629 = vmatpush.msra.mxu0 %v363
        %630 = vmatpush.msra.mxu0 %v359
        %631 = vmatpush.msra.mxu0 %v355
        %632 = vmatpush.msra.mxu0 %v351
        %633 = vmatpush.msra.mxu0 %v347
        %634 = vmatpush.msra.mxu0 %v343
        %635 = vmatpush.msra.mxu0 %v339
        %636 = vmatpush.msra.mxu0 %v335
        %637 = vmatpush.msra.mxu0 %v331
        %638 = vmatpush.msra.mxu0 %v327
        %639 = vmatpush.msra.mxu0 %v323
        %640 = vmatpush.msra.mxu0 %v319
        %641 = vmatmul.f32.gmra.mxu0 %v247
        %v642 = vpop.f32.mrf.mxu0
        %v643 = vadd.f32 %v620, %v642
        %644 = vmatmul.f32.gmra.mxu0 %v251
        %v645 = vpop.f32.mrf.mxu0
        %v646 = vadd.f32 %v623, %v645
        %647 = vdwg.mxu0
        %648 = vmatpush.msra.mxu0 %v443
        %649 = vmatpush.msra.mxu0 %v439
        %650 = vmatpush.msra.mxu0 %v435
        %651 = vmatpush.msra.mxu0 %v431
        %652 = vmatpush.msra.mxu0 %v427
        %653 = vmatpush.msra.mxu0 %v423
        %654 = vmatpush.msra.mxu0 %v419
        %655 = vmatpush.msra.mxu0 %v415
        %656 = vmatpush.msra.mxu0 %v411
        %657 = vmatpush.msra.mxu0 %v407
        %658 = vmatpush.msra.mxu0 %v403
        %659 = vmatpush.msra.mxu0 %v399
        %660 = vmatpush.msra.mxu0 %v395
        %661 = vmatpush.msra.mxu0 %v391
        %662 = vmatpush.msra.mxu0 %v387
        %663 = vmatpush.msra.mxu0 %v383
        %664 = vmatmul.f32.gmra.mxu0 %v248
        %v665 = vpop.f32.mrf.mxu0
        %v666 = vadd.f32 %v643, %v665
        %667 = vmatmul.f32.gmra.mxu0 %v252
        %v668 = vpop.f32.mrf.mxu0
        %v669 = vadd.f32 %v646, %v668
        %670 = vdwg.mxu0
        %671 = vmatpush.msra.mxu0 %v507
        %672 = vmatpush.msra.mxu0 %v503
        %673 = vmatpush.msra.mxu0 %v499
        %674 = vmatpush.msra.mxu0 %v495
        %675 = vmatpush.msra.mxu0 %v491
        %676 = vmatpush.msra.mxu0 %v487
        %677 = vmatpush.msra.mxu0 %v483
        %678 = vmatpush.msra.mxu0 %v479
        %679 = vmatpush.msra.mxu0 %v475
        %680 = vmatpush.msra.mxu0 %v471
        %681 = vmatpush.msra.mxu0 %v467
        %682 = vmatpush.msra.mxu0 %v463
        %683 = vmatpush.msra.mxu0 %v459
        %684 = vmatpush.msra.mxu0 %v455
        %685 = vmatpush.msra.mxu0 %v451
        %686 = vmatpush.msra.mxu0 %v447
        %687 = vmatmul.f32.gmra.mxu0 %v249
        %v688 = vpop.f32.mrf.mxu0
        %v689 = vadd.f32 %v666, %v688
        %690 = vmatmul.f32.gmra.mxu0 %v253
        %v691 = vpop.f32.mrf.mxu0
        %v692 = vadd.f32 %v669, %v691
        %693 = vdwg.mxu0
        %694 = vmatpush.msra.mxu0 %v316
        %695 = vmatpush.msra.mxu0 %v312
        %696 = vmatpush.msra.mxu0 %v308
        %697 = vmatpush.msra.mxu0 %v304
        %698 = vmatpush.msra.mxu0 %v300
        %699 = vmatpush.msra.mxu0 %v296
        %700 = vmatpush.msra.mxu0 %v292
        %701 = vmatpush.msra.mxu0 %v288
        %702 = vmatpush.msra.mxu0 %v284
        %703 = vmatpush.msra.mxu0 %v280
        %704 = vmatpush.msra.mxu0 %v276
        %705 = vmatpush.msra.mxu0 %v272
        %706 = vmatpush.msra.mxu0 %v268
        %707 = vmatpush.msra.mxu0 %v264
        %708 = vmatpush.msra.mxu0 %v260
        %709 = vmatpush.msra.mxu0 %v256
        %710 = vmatmul.f32.gmra.mxu0 %v246
        %v711 = vpop.f32.mrf.mxu0
        %v712 = vadd.f32 0.0, %v711
        %713 = vmatmul.f32.gmra.mxu0 %v250
        %v714 = vpop.f32.mrf.mxu0
        %v715 = vadd.f32 0.0, %v714
        %716 = vdwg.mxu0
        %717 = vmatpush.msra.mxu0 %v380
        %718 = vmatpush.msra.mxu0 %v376
        %719 = vmatpush.msra.mxu0 %v372
        %720 = vmatpush.msra.mxu0 %v368
        %721 = vmatpush.msra.mxu0 %v364
        %722 = vmatpush.msra.mxu0 %v360
        %723 = vmatpush.msra.mxu0 %v356
        %724 = vmatpush.msra.mxu0 %v352
        %725 = vmatpush.msra.mxu0 %v348
        %726 = vmatpush.msra.mxu0 %v344
        %727 = vmatpush.msra.mxu0 %v340
        %728 = vmatpush.msra.mxu0 %v336
        %729 = vmatpush.msra.mxu0 %v332
        %730 = vmatpush.msra.mxu0 %v328
        %731 = vmatpush.msra.mxu0 %v324
        %732 = vmatpush.msra.mxu0 %v320
        %733 = vmatmul.f32.gmra.mxu0 %v247
        %v734 = vpop.f32.mrf.mxu0
        %v735 = vadd.f32 %v712, %v734
        %736 = vmatmul.f32.gmra.mxu0 %v251
        %v737 = vpop.f32.mrf.mxu0
        %v738 = vadd.f32 %v715, %v737
        %739 = vdwg.mxu0
        %740 = vmatpush.msra.mxu0 %v444
        %741 = vmatpush.msra.mxu0 %v440
        %742 = vmatpush.msra.mxu0 %v436
        %743 = vmatpush.msra.mxu0 %v432
        %744 = vmatpush.msra.mxu0 %v428
        %745 = vmatpush.msra.mxu0 %v424
        %746 = vmatpush.msra.mxu0 %v420
        %747 = vmatpush.msra.mxu0 %v416
        %748 = vmatpush.msra.mxu0 %v412
        %749 = vmatpush.msra.mxu0 %v408
        %750 = vmatpush.msra.mxu0 %v404
        %751 = vmatpush.msra.mxu0 %v400
        %752 = vmatpush.msra.mxu0 %v396
        %753 = vmatpush.msra.mxu0 %v392
        %754 = vmatpush.msra.mxu0 %v388
        %755 = vmatpush.msra.mxu0 %v384
        %756 = vmatmul.f32.gmra.mxu0 %v248
        %v757 = vpop.f32.mrf.mxu0
        %v758 = vadd.f32 %v735, %v757
        %759 = vmatmul.f32.gmra.mxu0 %v252
        %v760 = vpop.f32.mrf.mxu0
        %v761 = vadd.f32 %v738, %v760
        %762 = vdwg.mxu0
        %763 = vmatpush.msra.mxu0 %v508
        %764 = vmatpush.msra.mxu0 %v504
        %765 = vmatpush.msra.mxu0 %v500
        %766 = vmatpush.msra.mxu0 %v496
        %767 = vmatpush.msra.mxu0 %v492
        %768 = vmatpush.msra.mxu0 %v488
        %769 = vmatpush.msra.mxu0 %v484
        %770 = vmatpush.msra.mxu0 %v480
        %771 = vmatpush.msra.mxu0 %v476
        %772 = vmatpush.msra.mxu0 %v472
        %773 = vmatpush.msra.mxu0 %v468
        %774 = vmatpush.msra.mxu0 %v464
        %775 = vmatpush.msra.mxu0 %v460
        %776 = vmatpush.msra.mxu0 %v456
        %777 = vmatpush.msra.mxu0 %v452
        %778 = vmatpush.msra.mxu0 %v448
        %779 = vmatmul.f32.gmra.mxu0 %v249
        %v780 = vpop.f32.mrf.mxu0
        %v781 = vadd.f32 %v758, %v780
        %782 = vmatmul.f32.gmra.mxu0 %v253
        %v783 = vpop.f32.mrf.mxu0
        %v784 = vadd.f32 %v761, %v783
        %785 = vdwg.mxu0
        %786 = vmatpush.msra.mxu0 %v317
        %787 = vmatpush.msra.mxu0 %v313
        %788 = vmatpush.msra.mxu0 %v309
        %789 = vmatpush.msra.mxu0 %v305
        %790 = vmatpush.msra.mxu0 %v301
        %791 = vmatpush.msra.mxu0 %v297
        %792 = vmatpush.msra.mxu0 %v293
        %793 = vmatpush.msra.mxu0 %v289
        %794 = vmatpush.msra.mxu0 %v285
        %795 = vmatpush.msra.mxu0 %v281
        %796 = vmatpush.msra.mxu0 %v277
        %797 = vmatpush.msra.mxu0 %v273
        %798 = vmatpush.msra.mxu0 %v269
        %799 = vmatpush.msra.mxu0 %v265
        %800 = vmatpush.msra.mxu0 %v261
        %801 = vmatpush.msra.mxu0 %v257
        %802 = vmatmul.f32.gmra.mxu0 %v246
        %v803 = vpop.f32.mrf.mxu0
        %v804 = vadd.f32 0.0, %v803
        %805 = vmatmul.f32.gmra.mxu0 %v250
        %v806 = vpop.f32.mrf.mxu0
        %v807 = vadd.f32 0.0, %v806
        %808 = vdwg.mxu0
        %809 = vmatpush.msra.mxu0 %v381
        %810 = vmatpush.msra.mxu0 %v377
        %811 = vmatpush.msra.mxu0 %v373
        %812 = vmatpush.msra.mxu0 %v369
        %813 = vmatpush.msra.mxu0 %v365
        %814 = vmatpush.msra.mxu0 %v361
        %815 = vmatpush.msra.mxu0 %v357
        %816 = vmatpush.msra.mxu0 %v353
        %817 = vmatpush.msra.mxu0 %v349
        %818 = vmatpush.msra.mxu0 %v345
        %819 = vmatpush.msra.mxu0 %v341
        %820 = vmatpush.msra.mxu0 %v337
        %821 = vmatpush.msra.mxu0 %v333
        %822 = vmatpush.msra.mxu0 %v329
        %823 = vmatpush.msra.mxu0 %v325
        %824 = vmatpush.msra.mxu0 %v321
        %825 = vmatmul.f32.gmra.mxu0 %v247
        %v826 = vpop.f32.mrf.mxu0
        %v827 = vadd.f32 %v804, %v826
        %828 = vmatmul.f32.gmra.mxu0 %v251
        %v829 = vpop.f32.mrf.mxu0
        %v830 = vadd.f32 %v807, %v829
        %831 = vdwg.mxu0
        %832 = vmatpush.msra.mxu0 %v445
        %833 = vmatpush.msra.mxu0 %v441
        %834 = vmatpush.msra.mxu0 %v437
        %835 = vmatpush.msra.mxu0 %v433
        %836 = vmatpush.msra.mxu0 %v429
        %837 = vmatpush.msra.mxu0 %v425
        %838 = vmatpush.msra.mxu0 %v421
        %839 = vmatpush.msra.mxu0 %v417
        %840 = vmatpush.msra.mxu0 %v413
        %841 = vmatpush.msra.mxu0 %v409
        %842 = vmatpush.msra.mxu0 %v405
        %843 = vmatpush.msra.mxu0 %v401
        %844 = vmatpush.msra.mxu0 %v397
        %845 = vmatpush.msra.mxu0 %v393
        %846 = vmatpush.msra.mxu0 %v389
        %847 = vmatpush.msra.mxu0 %v385
        %848 = vmatmul.f32.gmra.mxu0 %v248
        %v849 = vpop.f32.mrf.mxu0
        %v850 = vadd.f32 %v827, %v849
        %851 = vmatmul.f32.gmra.mxu0 %v252
        %v852 = vpop.f32.mrf.mxu0
        %v853 = vadd.f32 %v830, %v852
        %854 = vdwg.mxu0
        %855 = vmatpush.msra.mxu0 %v509
        %856 = vmatpush.msra.mxu0 %v505
        %857 = vmatpush.msra.mxu0 %v501
        %858 = vmatpush.msra.mxu0 %v497
        %859 = vmatpush.msra.mxu0 %v493
        %860 = vmatpush.msra.mxu0 %v489
        %861 = vmatpush.msra.mxu0 %v485
        %862 = vmatpush.msra.mxu0 %v481
        %863 = vmatpush.msra.mxu0 %v477
        %864 = vmatpush.msra.mxu0 %v473
        %865 = vmatpush.msra.mxu0 %v469
        %866 = vmatpush.msra.mxu0 %v465
        %867 = vmatpush.msra.mxu0 %v461
        %868 = vmatpush.msra.mxu0 %v457
        %869 = vmatpush.msra.mxu0 %v453
        %870 = vmatpush.msra.mxu0 %v449
        %871 = vmatmul.f32.gmra.mxu0 %v249
        %v872 = vpop.f32.mrf.mxu0
        %v873 = vadd.f32 %v850, %v872
        %874 = vmatmul.f32.gmra.mxu0 %v253
        %v875 = vpop.f32.mrf.mxu0
        %v876 = vadd.f32 %v853, %v875
        %877 = vdwg.mxu0
        %v878 = vadd.f32 %v238, %v597
        %v879 = vadd.f32 %v239, %v689
        %v880 = vadd.f32 %v240, %v781
        %v881 = vadd.f32 %v241, %v873
        %v882 = vadd.f32 %v242, %v600
        %v883 = vadd.f32 %v243, %v692
        %v884 = vadd.f32 %v244, %v784
        %v885 = vadd.f32 %v245, %v876
        %886 = vst [vmem:[#allocation2] sm:$0xff] %v878
        %887 = vst [vmem:[#allocation2 + $0x8] sm:$0xff] %v879
        %888 = vst [vmem:[#allocation2 + $0x10] sm:$0xff] %v880
        %889 = vst [vmem:[#allocation2 + $0x18] sm:$0xff] %v881
        %890 = vst [vmem:[#allocation2 + $0x20] sm:$0xff] %v882
        %891 = vst [vmem:[#allocation2 + $0x28] sm:$0xff] %v883
        %892 = vst [vmem:[#allocation2 + $0x30] sm:$0xff] %v884
        %893 = vst [vmem:[#allocation2 + $0x38] sm:$0xff] %v885
        // Predicated region
        $region41: #{tpu_custom_call.1} parent=27 // pred_check
          %p894 = pneg %p226
        $region42: #{tpu_custom_call.1} parent=27 // pred_check_branch
          %896 = sbr.rel (%p894) target = $region44
        $region43: #{tpu_custom_call.1} parent=27 // pred_region
          %v897 = vld [vmem:[#allocation2] sm:$0xff]
          %v898 = vld [vmem:[#allocation2 + $0x8] sm:$0xff]
          %v899 = vld [vmem:[#allocation2 + $0x10] sm:$0xff]
          %v900 = vld [vmem:[#allocation2 + $0x18] sm:$0xff]
          %v901 = vld [vmem:[#allocation2 + $0x20] sm:$0xff]
          %v902 = vld [vmem:[#allocation2 + $0x28] sm:$0xff]
          %v903 = vld [vmem:[#allocation2 + $0x30] sm:$0xff]
          %v904 = vld [vmem:[#allocation2 + $0x38] sm:$0xff]
          %905 = vst [vmem:[%s219] sm:$0xff] %v897
          %906 = vst [vmem:[%s219 + $0x8] sm:$0xff] %v898
          %907 = vst [vmem:[%s219 + $0x10] sm:$0xff] %v899
          %908 = vst [vmem:[%s219 + $0x18] sm:$0xff] %v900
          %909 = vst [vmem:[%s219 + $0x20] sm:$0xff] %v901
          %910 = vst [vmem:[%s219 + $0x28] sm:$0xff] %v902
          %911 = vst [vmem:[%s219 + $0x30] sm:$0xff] %v903
          %912 = vst [vmem:[%s219 + $0x38] sm:$0xff] %v904
        $region44: #{tpu_custom_call.1} parent=27 // pred_fallthru
          _
        %s913 = sand.u32 %s105, 1
        %s914 = scalar_lea.sflag [#allocation5], %s913
        %s915 = sand.u32 %s105, 1
        %s916 = smul.addr %s915, 64
        %s917 = scalar_lea.vmem [#allocation8], %s916
        // Predicated region
        $region45: #{tpu_custom_call.1} parent=27 // pred_check
          %p918 = pneg %p115
        $region46: #{tpu_custom_call.1} parent=27 // pred_check_branch
          %920 = sbr.rel (%p918) target = $region48
        $region47: #{tpu_custom_call.1} parent=27 // pred_region
          %s921 = smul.u32 2, %s25
          %s922 = smul.u32 4, %s26
          %924 = vsyncadd %s914, 0
          %s925 = smul.addr %s921, 8
          %s926 = sadd.s32 %s922, %s925
          %s927 = smul.addr %s926, 8
          %s928 = scalar_lea.hbm %s2, %s927
          %s929 = sshll.u32 %s917, 4
          %s930 = int_to_ptr.vmem [resolvable:$true] %s929
          %s931 = sshll.u32 %s928, 4
          %s932 = int_to_ptr.hbm [resolvable:$true] %s931
          %937 = dma.vmem_to_hbm [thread:$0]  %s930, 1024, %s932, %s914, 512, 1024, 32
        $region48: #{tpu_custom_call.1} parent=27 // pred_fallthru
          _
      $region28: #{tpu_custom_call.1} parent=5 // pred_fallthru
        _
      %p938 = scmp.le.s32.totalorder 2, %s15
      // Predicated region
      $region49: #{tpu_custom_call.1} parent=5 // pred_check
        %p939 = pneg %p938
      $region50: #{tpu_custom_call.1} parent=5 // pred_check_branch
        %941 = sbr.rel (%p939) target = $region52
      $region51: #{tpu_custom_call.1} parent=5 // pred_region
        %s942 = ssub.s32 %s15, 2
        // Predicated region
        $region53: #{tpu_custom_call.1} parent=51 // pred_check
          %p943 = pneg %p121
        $region54: #{tpu_custom_call.1} parent=51 // pred_check_branch
          %945 = sbr.rel (%p943) target = $region56
        $region55: #{tpu_custom_call.1} parent=51 // pred_region
          %s946 = sand.u32 %s106, 1
          %s947 = scalar_lea.sflag [#allocation5], %s946
          %s948 = sand.u32 %s106, 1
          %s949 = smul.addr %s948, 64
          %s950 = scalar_lea.vmem [#allocation8], %s949
          %952 = dma.done %s947, 1024
        $region56: #{tpu_custom_call.1} parent=51 // pred_fallthru
          _
      $region52: #{tpu_custom_call.1} parent=5 // pred_fallthru
        _
    $region6: #{tpu_custom_call.1} parent=1 // loop_footer
      %s19 = sadd.s32 1, %s15
    $region7: #{tpu_custom_call.1} parent=1 // loop_footer_branch
      %14 = sbr.rel target = $region3
    $region8: #{tpu_custom_call.1} parent=1 // loop_exit
      _
    %953 = vsyncpa [#allocation4], 1
    %s954 = scalar_lea.sflag [#allocation4], 1
    %955 = vsyncpa %s954, 1
    %956 = vsyncpa [#allocation7], 1
    %s957 = scalar_lea.sflag [#allocation7], 1
    %958 = vsyncpa %s957, 1
    %959 = vsyncpa [#allocation5], 1
    %s960 = scalar_lea.sflag [#allocation5], 1
    %961 = vsyncpa %s960, 1

</llo_original>
